<compile_context>
chip_gen: v6e
topology: v6e:2x2x1
jax: 0.10.0
libtpu: 0.0.40
codegen_flags: <defaults>
</compile_context>

<pallas_src>
import jax
import jax.numpy as jnp
from jax.experimental import pallas as pl
from jax.experimental.pallas import tpu as pltpu

DT = 1.0 / 20.0
N_STATE = 4
N_CTRL = 2
_LANE = 128                 # vreg lane width
_DEFAULT_TILE_ROWS = 1024   # 1024 rows * 128 lanes = 128K batch elems / step


def _round_up(a, b):
    return ((a + b - 1) // b) * b


def _choose_tile_rows(total_rows, requested_rows):
    tr = min(requested_rows, total_rows)
    # Prefer >= 2 grid steps when there is enough work so v7x's second
    # TensorCore gets a share (dimension_semantics=("parallel",)).
    if tr == total_rows and total_rows >= 16:
        tr = _round_up((total_rows + 1) // 2, 8)
    if tr < total_rows:
        # (8, 128) block constraint: second-to-last block dim must be a
        # multiple of 8 unless it spans the full array dim.
        tr = max(8, (tr // 8) * 8)
    return tr


def _bike_kernel(params_ref, x_ref, u_ref, o_ref):
    # params live in SMEM via scalar prefetch: [l, k1, k2]
    l = params_ref[0]
    k1 = params_ref[1]
    k2 = params_ref[2]
    dt_k1 = DT * k1      # scalar, folded once
    dt_over_l = DT / l   # scalar, folded once

    # Dense (tile_rows, 128) tiles: full-vreg VPU/EUP work.
    xp = x_ref[0]
    yp = x_ref[1]
    v = x_ref[2]
    phi = x_ref[3]
    u0 = u_ref[0]
    u1 = u_ref[1]

    dtv = DT * v          # reused by rows 0 and 1
    delta = u1 * k2

    # TODO(synk): if profiling shows jnp.tan lowering to a full-precision
    # divide that binds the VALU, switch to
    # jnp.sin(delta) * pl.reciprocal(jnp.cos(delta), approx=True)
    # (kept exact here to preserve tight numerical agreement with the module).
    o_ref[0] = xp + dtv * jnp.cos(phi)
    o_ref[1] = yp + dtv * jnp.sin(phi)
    o_ref[2] = v + dt_k1 * u0
    o_ref[3] = phi + dt_over_l * (v * jnp.tan(delta))


def bike_model_step_soa(x_soa, u_soa, params, tile_rows=_DEFAULT_TILE_ROWS):
    """One Euler step in SoA layout.

    x_soa: (4, R, 128) f32, u_soa: (2, R, 128) f32, params: (3,) f32 [l, k1, k2]
    Returns (4, R, 128) f32.  Keep state in this layout across timesteps to
    avoid any relayout traffic.
    """
    rows = x_soa.shape[1]
    tr = _choose_tile_rows(rows, tile_rows)
    grid = (pl.cdiv(rows, tr),)

    return pl.pallas_call(
        _bike_kernel,
        out_shape=jax.ShapeDtypeStruct((N_STATE, rows, _LANE), jnp.float32),
        grid_spec=pltpu.PrefetchScalarGridSpec(
            num_scalar_prefetch=1,  # params -> SMEM, passed to index_maps
            grid=grid,
            in_specs=[
                pl.BlockSpec((N_STATE, tr, _LANE), lambda i, p: (0, i, 0)),  # x
                pl.BlockSpec((N_CTRL, tr, _LANE), lambda i, p: (0, i, 0)),   # u
            ],
            out_specs=pl.BlockSpec((N_STATE, tr, _LANE), lambda i, p: (0, i, 0)),
        ),
        compiler_params=pltpu.CompilerParams(
            # Batch rows are fully independent -> shard across TensorCores.
            dimension_semantics=("parallel",),
            # ~10 MiB double-buffered at the default tile; explicit limit keeps
            # v5e (16 MiB scoped default) happy and leaves v7x headroom.
            vmem_limit_bytes=32 * 1024 * 1024,
        ),
    )(params.astype(jnp.float32), x_soa, u_soa)


def bike_model_forward(x_init, u, params, tile_rows=_DEFAULT_TILE_ROWS):
    """Module-compatible wrapper.

    x_init: (N, 4) f32, u: (N, 2) f32, params: (3,) f32 [l, k1, k2] -> (N, 4) f32.
    The transpose/pad here is boundary-only; multi-step rollouts should call
    bike_model_step_soa directly on the SoA state.
    """
    n = x_init.shape[0]
    n_lanes = _round_up(max(n, 1), _LANE)
    rows = n_lanes // _LANE
    pad = n_lanes - n

    xt = jnp.transpose(x_init.astype(jnp.float32))  # (4, N)
    ut = jnp.transpose(u.astype(jnp.float32))       # (2, N)
    if pad:
        xt = jnp.pad(xt, ((0, 0), (0, pad)))
        ut = jnp.pad(ut, ((0, 0), (0, pad)))

    x_soa = xt.reshape(N_STATE, rows, _LANE)
    u_soa = ut.reshape(N_CTRL, rows, _LANE)

    out_soa = bike_model_step_soa(x_soa, u_soa, params, tile_rows)

    out = out_soa.reshape(N_STATE, n_lanes)[:, :n]
    return jnp.transpose(out)

# TODO(synk): the module's real usage is n~8 per MPC step; a single-step kernel
# cannot beat fused XLA there.  Fuse the T-step Euler rollout into one
# pallas_call with the (4, R, 128) state resident in VMEM scratch to amortize
# the per-call dispatch/relayout cost across the whole horizon.


def bike_model_reference(x_init, u, params, dt=DT):
    l, k1, k2 = params[0], params[1], params[2]
    v, phi = x_init[:, 2], x_init[:, 3]
    a = u[:, 0] * k1
    delta = u[:, 1] * k2
    x_dot = jnp.stack(
        [v * jnp.cos(phi), v * jnp.sin(phi), a, v * jnp.tan(delta) / l],
        axis=-1)
    return x_init + dt * x_dot


if __name__ == "__main__":
    key = jax.random.PRNGKey(0)
    params = jnp.ones((3,), dtype=jnp.float32)  # matches torch.ones(3)

    ok = True
    # (1) tiny batch, consistent with the module's per-MPC-step usage
    # (2) a larger batch that exercises the multi-row grid / ragged last block
    for n in (8, 2560):
        kx, ku, key = jax.random.split(key, 3)
        x_init = jax.random.normal(kx, (n, N_STATE), dtype=jnp.float32)
        u_raw = jax.random.uniform(ku, (n, N_CTRL), dtype=jnp.float32,
                                   minval=-1.0, maxval=1.0)
        # controls within the module's bounds u_lower/u_upper
        u = u_raw * jnp.array([1.0, 0.2], dtype=jnp.float32)

        out = bike_model_forward(x_init, u, params)
        out = jax.block_until_ready(out)

        ref = bike_model_reference(x_init, u, params)
        ok = ok and out.shape == (n, N_STATE)
        ok = ok and bool(jnp.allclose(out, ref, atol=1e-5, rtol=1e-5))

    assert ok
    print("KERNEL_OK")
</pallas_src>

<mosaic_0001>
module attributes {stable_mosaic.version = 11 : i64} {
  func.func @_bike_kernel(%arg0: i32, %arg1: memref<3xf32, #tpu.memory_space<smem>>, %arg2: memref<4x1x128xf32, #tpu.memory_space<vmem>>, %arg3: memref<2x1x128xf32, #tpu.memory_space<vmem>>, %arg4: memref<4x1x128xf32, #tpu.memory_space<vmem>>) attributes {dimension_semantics = [#tpu.dimension_semantics<parallel>], iteration_bounds = array<i64: 1>, scalar_prefetch = 1 : i64, scratch_operands = 0 : i64, tpu.core_type = #tpu.core_type<tc>, window_params = [{transform_indices = @transform_0, window_bounds = array<i64: 4, 1, 128>}, {transform_indices = @transform_1, window_bounds = array<i64: 2, 1, 128>}, {transform_indices = @transform_2, window_bounds = array<i64: 4, 1, 128>}]} {
    %c0 = arith.constant 0 : index
    %0 = memref.load %arg1[%c0] : memref<3xf32, #tpu.memory_space<smem>>
    %c1 = arith.constant 1 : index
    %1 = memref.load %arg1[%c1] : memref<3xf32, #tpu.memory_space<smem>>
    %c2 = arith.constant 2 : index
    %2 = memref.load %arg1[%c2] : memref<3xf32, #tpu.memory_space<smem>>
    %cst = arith.constant 5.000000e-02 : f32
    %3 = arith.mulf %cst, %1 : f32
    %cst_0 = arith.constant 5.000000e-02 : f32
    %4 = arith.divf %cst_0, %0 : f32
    %c0_1 = arith.constant 0 : index
    %c0_2 = arith.constant 0 : index
    %c0_3 = arith.constant 0 : index
    %5 = vector.load %arg2[%c0_1, %c0_2, %c0_3] : memref<4x1x128xf32, #tpu.memory_space<vmem>>, vector<1x1x128xf32>
    %6 = vector.shape_cast %5 : vector<1x1x128xf32> to vector<1x128xf32>
    %c1_4 = arith.constant 1 : index
    %c0_5 = arith.constant 0 : index
    %c0_6 = arith.constant 0 : index
    %7 = vector.load %arg2[%c1_4, %c0_5, %c0_6] : memref<4x1x128xf32, #tpu.memory_space<vmem>>, vector<1x1x128xf32>
    %8 = vector.shape_cast %7 : vector<1x1x128xf32> to vector<1x128xf32>
    %c2_7 = arith.constant 2 : index
    %c0_8 = arith.constant 0 : index
    %c0_9 = arith.constant 0 : index
    %9 = vector.load %arg2[%c2_7, %c0_8, %c0_9] : memref<4x1x128xf32, #tpu.memory_space<vmem>>, vector<1x1x128xf32>
    %10 = vector.shape_cast %9 : vector<1x1x128xf32> to vector<1x128xf32>
    %c3 = arith.constant 3 : index
    %c0_10 = arith.constant 0 : index
    %c0_11 = arith.constant 0 : index
    %11 = vector.load %arg2[%c3, %c0_10, %c0_11] : memref<4x1x128xf32, #tpu.memory_space<vmem>>, vector<1x1x128xf32>
    %12 = vector.shape_cast %11 : vector<1x1x128xf32> to vector<1x128xf32>
    %c0_12 = arith.constant 0 : index
    %c0_13 = arith.constant 0 : index
    %c0_14 = arith.constant 0 : index
    %13 = vector.load %arg3[%c0_12, %c0_13, %c0_14] : memref<2x1x128xf32, #tpu.memory_space<vmem>>, vector<1x1x128xf32>
    %14 = vector.shape_cast %13 : vector<1x1x128xf32> to vector<1x128xf32>
    %c1_15 = arith.constant 1 : index
    %c0_16 = arith.constant 0 : index
    %c0_17 = arith.constant 0 : index
    %15 = vector.load %arg3[%c1_15, %c0_16, %c0_17] : memref<2x1x128xf32, #tpu.memory_space<vmem>>, vector<1x1x128xf32>
    %16 = vector.shape_cast %15 : vector<1x1x128xf32> to vector<1x128xf32>
    %cst_18 = arith.constant 5.000000e-02 : f32
    %17 = vector.broadcast %cst_18 : f32 to vector<1x128xf32>
    %18 = arith.mulf %17, %10 : vector<1x128xf32>
    %19 = vector.broadcast %2 : f32 to vector<1x128xf32>
    %20 = arith.mulf %16, %19 : vector<1x128xf32>
    %21 = math.cos %12 : vector<1x128xf32>
    %22 = arith.mulf %18, %21 : vector<1x128xf32>
    %23 = arith.addf %6, %22 : vector<1x128xf32>
    %c0_19 = arith.constant 0 : index
    %c0_20 = arith.constant 0 : index
    %c0_21 = arith.constant 0 : index
    %24 = vector.load %arg4[%c0_19, %c0_20, %c0_21] : memref<4x1x128xf32, #tpu.memory_space<vmem>>, vector<1x1x128xf32>
    %25 = vector.shape_cast %24 : vector<1x1x128xf32> to vector<1x128xf32>
    %26 = vector.shape_cast %23 : vector<1x128xf32> to vector<1x1x128xf32>
    tpu.vector_store %arg4[%c0_19, %c0_20, %c0_21], %26 {strides = array<i32>} : memref<4x1x128xf32, #tpu.memory_space<vmem>>, vector<1x1x128xf32>,
    %27 = math.sin %12 : vector<1x128xf32>
    %28 = arith.mulf %18, %27 : vector<1x128xf32>
    %29 = arith.addf %8, %28 : vector<1x128xf32>
    %c1_22 = arith.constant 1 : index
    %c0_23 = arith.constant 0 : index
    %c0_24 = arith.constant 0 : index
    %30 = vector.load %arg4[%c1_22, %c0_23, %c0_24] : memref<4x1x128xf32, #tpu.memory_space<vmem>>, vector<1x1x128xf32>
    %31 = vector.shape_cast %30 : vector<1x1x128xf32> to vector<1x128xf32>
    %32 = vector.shape_cast %29 : vector<1x128xf32> to vector<1x1x128xf32>
    tpu.vector_store %arg4[%c1_22, %c0_23, %c0_24], %32 {strides = array<i32>} : memref<4x1x128xf32, #tpu.memory_space<vmem>>, vector<1x1x128xf32>,
    %33 = vector.broadcast %3 : f32 to vector<1x128xf32>
    %34 = arith.mulf %33, %14 : vector<1x128xf32>
    %35 = arith.addf %10, %34 : vector<1x128xf32>
    %c2_25 = arith.constant 2 : index
    %c0_26 = arith.constant 0 : index
    %c0_27 = arith.constant 0 : index
    %36 = vector.load %arg4[%c2_25, %c0_26, %c0_27] : memref<4x1x128xf32, #tpu.memory_space<vmem>>, vector<1x1x128xf32>
    %37 = vector.shape_cast %36 : vector<1x1x128xf32> to vector<1x128xf32>
    %38 = vector.shape_cast %35 : vector<1x128xf32> to vector<1x1x128xf32>
    tpu.vector_store %arg4[%c2_25, %c0_26, %c0_27], %38 {strides = array<i32>} : memref<4x1x128xf32, #tpu.memory_space<vmem>>, vector<1x1x128xf32>,
    %39 = math.tan %20 : vector<1x128xf32>
    %40 = arith.mulf %10, %39 : vector<1x128xf32>
    %41 = vector.broadcast %4 : f32 to vector<1x128xf32>
    %42 = arith.mulf %41, %40 : vector<1x128xf32>
    %43 = arith.addf %12, %42 : vector<1x128xf32>
    %c3_28 = arith.constant 3 : index
    %c0_29 = arith.constant 0 : index
    %c0_30 = arith.constant 0 : index
    %44 = vector.load %arg4[%c3_28, %c0_29, %c0_30] : memref<4x1x128xf32, #tpu.memory_space<vmem>>, vector<1x1x128xf32>
    %45 = vector.shape_cast %44 : vector<1x1x128xf32> to vector<1x128xf32>
    %46 = vector.shape_cast %43 : vector<1x128xf32> to vector<1x1x128xf32>
    tpu.vector_store %arg4[%c3_28, %c0_29, %c0_30], %46 {strides = array<i32>} : memref<4x1x128xf32, #tpu.memory_space<vmem>>, vector<1x1x128xf32>,
    return
  }
  func.func @transform_0(%arg0: i32, %arg1: memref<3xf32, #tpu.memory_space<smem>>) -> (i32, i32, i32) {
    %c0_i32 = arith.constant 0 : i32
    %c0_i32_0 = arith.constant 0 : i32
    %c0_i32_1 = arith.constant 0 : i32
    return %c0_i32, %arg0, %c0_i32_0 : i32, i32, i32
  }
  func.func @transform_1(%arg0: i32, %arg1: memref<3xf32, #tpu.memory_space<smem>>) -> (i32, i32, i32) {
    %c0_i32 = arith.constant 0 : i32
    %c0_i32_0 = arith.constant 0 : i32
    %c0_i32_1 = arith.constant 0 : i32
    return %c0_i32, %arg0, %c0_i32_0 : i32, i32, i32
  }
  func.func @transform_2(%arg0: i32, %arg1: memref<3xf32, #tpu.memory_space<smem>>) -> (i32, i32, i32) {
    %c0_i32 = arith.constant 0 : i32
    %c0_i32_0 = arith.constant 0 : i32
    %c0_i32_1 = arith.constant 0 : i32
    return %c0_i32, %arg0, %c0_i32_0 : i32, i32, i32
  }
}

</mosaic_0001>

<llo_original>
// kernel: tpu_custom_call.1
$region0: #{tpu_custom_call.1}
  #allocation0 [shape = 'u32[]', space=smem, size = 0x4, offset = 0x4, fixed_abs, tag = 'smem constant byte address 0x4 - core index']
  #allocation1 [shape = 'u32[144,128]{1,0:T(1,128)}', space=vmem, size = 0x12000, scoped, tag = 'internal scratch']
  #allocation2 [shape = 's32[1]{0}', space=sflag, size = 0x4, scoped, tag = 'scoped memory for tpu_custom_call.1']
  #allocation3 [shape = 'u8[512]{0}', space=smem, size = 0x200, scoped, tag = 'prefetched SMEM operand 0']
  %s0 = inlined_call_operand.hbm [shape: f32[3], index: 0, kind: input, shape index: {}]
  %s1 = inlined_call_operand.hbm [shape: f32[4,1,128], index: 1, kind: input, shape index: {}]
  %s2 = inlined_call_operand.vmem [shape: f32[2,1,128], index: 2, kind: input, shape index: {}]
  %s3 = inlined_call_operand.hbm [shape: f32[4,1,128], index: 3, kind: output, shape index: {}]
  %s4 = sld [smem:[#allocation0]]
  $region22: #{tpu_custom_call.1} parent=0
    _
  %s6 = ssub.s32 1, %s4
  %s7 = scalar_select 0, %s6, %s4
  %9 = dma.hbm_to_smem %s0, 16, [#allocation3], [#allocation2]
  %10 = dma.done [#allocation2], 16
  %11 = sfence
  $region1: #{tpu_custom_call.1} parent=0
    #allocation4 [shape = 'u8[2048]{0}', space=vmem, size = 0x800, scoped, tag = 'input window, operand 1, single buffered']
    #allocation5 [shape = 's32[1]{0}', space=sflag, size = 0x4, scoped, tag = 'scoped memory for tpu_custom_call.1']
    #allocation6 [shape = 's32[1]{0}', space=sflag, size = 0x4, scoped, tag = 'scoped memory for tpu_custom_call.1']
    #allocation7 [shape = 'u8[2048]{0}', space=vmem, size = 0x800, scoped, tag = 'output window, operand 0, single buffered']
    %12 = vsyncpa [#allocation5], 0
    %13 = vsyncpa [#allocation6], 0
    // Predicated region
    $region2: #{tpu_custom_call.1} parent=1 // pred_check
      _
    $region3: #{tpu_custom_call.1} parent=1 // pred_check_branch
      %15 = sbr.rel (0) target = $region5
    $region4: #{tpu_custom_call.1} parent=1 // pred_region
      %s17 = ssub.s32 64, 64
      %18 = vsyncadd [#allocation5], %s17
      %s19 = sshll.u32 [#allocation4], 4
      %s20 = int_to_ptr.vmem [resolvable:$true] %s19
      %25 = dma.hbm_to_vmem [thread:$0]  %s1, 64, %s20, [#allocation5], 16, 16, 1
    $region5: #{tpu_custom_call.1} parent=1 // pred_fallthru
      _
    // Predicated region
    $region6: #{tpu_custom_call.1} parent=1 // pred_check
      _
    $region7: #{tpu_custom_call.1} parent=1 // pred_check_branch
      %27 = sbr.rel (0) target = $region9
    $region8: #{tpu_custom_call.1} parent=1 // pred_region
      _
    $region9: #{tpu_custom_call.1} parent=1 // pred_fallthru
      _
    // Predicated region
    $region10: #{tpu_custom_call.1} parent=1 // pred_check
      _
    $region11: #{tpu_custom_call.1} parent=1 // pred_check_branch
      %29 = sbr.rel (0) target = $region13
    $region12: #{tpu_custom_call.1} parent=1 // pred_region
      %30 = dma.done [#allocation5], 64
    $region13: #{tpu_custom_call.1} parent=1 // pred_fallthru
      _
    %s31 = sld [smem:[#allocation3]]
    %s32 = sld [smem:[#allocation3 + $0x1]]
    %s33 = sld [smem:[#allocation3 + $0x2]]
    %s34 = smul.f32 %s32, 0.05
    %v35 = vstv %s31
    %v36 = vrcp.pop %v35
    %s37 = vtos %v36
    %s38 = smul.f32 0.05, %s37
    %v39 = vld [vmem:[#allocation4] sm:$0x1]
    %s40 = scalar_lea.vmem [#allocation4], 1
    %v41 = vld [vmem:[%s40] sm:$0x1]
    %s42 = scalar_lea.vmem [#allocation4], 2
    %v43 = vld [vmem:[%s42] sm:$0x1]
    %s44 = scalar_lea.vmem [#allocation4], 3
    %v45 = vld [vmem:[%s44] sm:$0x1]
    %v46 = vld [vmem:[%s2] sm:$0x1]
    %s47 = scalar_lea.vmem %s2, 1
    %v48 = vld [vmem:[%s47] sm:$0x1]
    %v49 = vmul.f32 %v43, 0.05
    %v50 = vstv %s33
    %v51 = vmul.f32 %v48, %v50
    %v52 = vand.u32 2147483647, %v45
    %vm53 = vcmp.le.f32.partialorder %v52, 0.7853982
    %vm54 = vcmp.lt.s32.totalorder %v45, 0
    %v55 = vand.u32 %v45, 2139095040
    %v56 = vshrl.u32 %v55, 23
    %v57 = vsub.s32 %v56, 127
    %v58 = vand.u32 2147483647, %v45
    %v59 = vand.u32 %v58, 8388607
    %v60 = vor.u32 %v59, 8388608
    %v61 = vsub.s32 0, %v60
    %v62 = vadd.s32 %v57, 1
    %vm63 = vcmp.gt.s32.totalorder %v62, 0
    %v64 = vsel %vm63, %v62, 0
    %v65 = vshrl.u32 %v64, 5
    %v66 = vand.u32 %v64, 31
    %v67 = vsub.s32 32, %v66
    %v68 = vshrl.u32 683565275, %v67
    %v69 = vshll.u32 683565275, %v66
    %v70 = vshrl.u32 2475754826, %v67
    %v71 = vor.u32 %v69, %v70
    %v72 = vshll.u32 2475754826, %v66
    %v73 = vshrl.u32 2131351028, %v67
    %v74 = vor.u32 %v72, %v73
    %v75 = vshll.u32 2131351028, %v66
    %v76 = vshrl.u32 2102212464, %v67
    %v77 = vor.u32 %v75, %v76
    %v78 = vshll.u32 2102212464, %v66
    %v79 = vshrl.u32 920167782, %v67
    %v80 = vor.u32 %v78, %v79
    %v81 = vshll.u32 920167782, %v66
    %v82 = vshrl.u32 1326507024, %v67
    %v83 = vor.u32 %v81, %v82
    %vm84 = vcmp.lt.s32.totalorder %v65, 1
    %vm85 = vcmp.lt.s32.totalorder %v65, 2
    %vm86 = vcmp.lt.s32.totalorder %v65, 3
    %vm87 = vcmp.lt.s32.totalorder %v65, 4
    %v88 = vsel %vm84, %v68, %v71
    %v89 = vsel %vm87, %v77, 2102212464
    %v90 = vsel %vm86, %v74, %v89
    %v91 = vsel %vm85, %v88, %v90
    %v92 = vsel %vm84, %v71, %v74
    %v93 = vsel %vm87, %v80, 920167782
    %v94 = vsel %vm86, %v77, %v93
    %v95 = vsel %vm85, %v92, %v94
    %v96 = vsel %vm84, %v74, %v77
    %v97 = vsel %vm87, %v83, 1326507024
    %v98 = vsel %vm86, %v80, %v97
    %v99 = vsel %vm85, %v96, %v98
    %v100 = vshll.u32 %v60, 8
    %v101 = vmul.u32.u64.compose %v100, %v99
    %v102 = vextract.low.u32 %v101
    %v103 = vextract.high.u32 %v101
    %v104 = vmul.u32.u64.compose %v100, %v95
    %v105 = vextract.low.u32 %v104
    %v106 = vextract.high.u32 %v104
    %v107 = vmul.u32 %v100, %v91
    %v108 = vadd.s32 %v103, %v105
    %vm109 = vc.u32 %v103, %v105
    %v110 = vadd.s32 %v106, 1
    %v111 = vsel %vm109, %v110, %v106
    %v112 = vadd.s32 %v107, %v111
    %v113 = vadd.s32 %v112, 536870912
    %v114 = vshrl.u32 %v113, 30
    %v115 = vshll.u32 %v114, 30
    %v116 = vsub.s32 %v112, %v115
    %vm117 = vcmp.lt.s32.totalorder %v116, 0
    %v118 = vsub.s32 0, %v116
    %v119 = vsel %vm117, %v118, %v116
    %v120 = vclz %v119
    %v121 = vsub.s32 %v120, 2
    %vm122 = vcmp.gt.s32.totalorder 0, %v121
    %v123 = vsel %vm122, 0, %v121
    %v124 = vsub.s32 32, %v123
    %v125 = vshll.u32 %v116, %v123
    %v126 = vshrl.u32 %v108, %v124
    %v127 = vor.u32 %v125, %v126
    %v128 = vsub.s32 4294967266, %v123
    %v129 = vadd.s32 %v128, 127
    %v130 = vshll.u32 %v129, 23
    %v131 = vor.u32 4788187, %v130
    %v132 = vand.u32 2147483647, %v131
    %v134 = vcvt.s32.f32 %v127
    %v135 = vmul.f32 %v134, %v132
    %v136 = vxor.u32 %v135, 2147483648
    %v137 = vsel %vm54, %v136, %v135
    %v138 = vsub.s32 4, %v114
    %v139 = vsel %vm54, %v138, %v114
    %v140 = vsel %vm53, %v45, %v137
    %v141 = vsel %vm53, 0, %v139
    %v142 = vcosq.f32.pop %v140
    %v143 = vsinq.f32.pop %v140
    %vm144 = vweird.f32 %v45
    %v145 = vand.u32 %v141, 3
    %vm146 = vcmp.lt.s32.totalorder %v145, 2
    %vm147 = vcmp.eq.s32.totalorder %v145, 0
    %v148 = vxor.u32 %v143, 2147483648
    %v149 = vsel %vm147, %v142, %v148
    %vm150 = vcmp.eq.s32.totalorder %v145, 2
    %v151 = vxor.u32 %v142, 2147483648
    %v152 = vsel %vm150, %v151, %v143
    %v153 = vsel %vm146, %v149, %v152
    %v154 = vsel %vm144, nan, %v153
    %v155 = vmul.f32 %v49, %v154
    %v156 = vadd.f32 %v39, %v155
    %157 = vst [vmem:[#allocation7] sm:$0x1] %v156
    %v158 = vand.u32 2147483647, %v45
    %vm159 = vcmp.le.f32.partialorder %v158, 0.7853982
    %vm160 = vcmp.lt.s32.totalorder %v45, 0
    %v161 = vand.u32 %v45, 2139095040
    %v162 = vshrl.u32 %v161, 23
    %v163 = vsub.s32 %v162, 127
    %v164 = vand.u32 2147483647, %v45
    %v165 = vand.u32 %v164, 8388607
    %v166 = vor.u32 %v165, 8388608
    %v167 = vsub.s32 0, %v166
    %v168 = vadd.s32 %v163, 1
    %vm169 = vcmp.gt.s32.totalorder %v168, 0
    %v170 = vsel %vm169, %v168, 0
    %v171 = vshrl.u32 %v170, 5
    %v172 = vand.u32 %v170, 31
    %v173 = vsub.s32 32, %v172
    %v174 = vshrl.u32 683565275, %v173
    %v175 = vshll.u32 683565275, %v172
    %v176 = vshrl.u32 2475754826, %v173
    %v177 = vor.u32 %v175, %v176
    %v178 = vshll.u32 2475754826, %v172
    %v179 = vshrl.u32 2131351028, %v173
    %v180 = vor.u32 %v178, %v179
    %v181 = vshll.u32 2131351028, %v172
    %v182 = vshrl.u32 2102212464, %v173
    %v183 = vor.u32 %v181, %v182
    %v184 = vshll.u32 2102212464, %v172
    %v185 = vshrl.u32 920167782, %v173
    %v186 = vor.u32 %v184, %v185
    %v187 = vshll.u32 920167782, %v172
    %v188 = vshrl.u32 1326507024, %v173
    %v189 = vor.u32 %v187, %v188
    %vm190 = vcmp.lt.s32.totalorder %v171, 1
    %vm191 = vcmp.lt.s32.totalorder %v171, 2
    %vm192 = vcmp.lt.s32.totalorder %v171, 3
    %vm193 = vcmp.lt.s32.totalorder %v171, 4
    %v194 = vsel %vm190, %v174, %v177
    %v195 = vsel %vm193, %v183, 2102212464
    %v196 = vsel %vm192, %v180, %v195
    %v197 = vsel %vm191, %v194, %v196
    %v198 = vsel %vm190, %v177, %v180
    %v199 = vsel %vm193, %v186, 920167782
    %v200 = vsel %vm192, %v183, %v199
    %v201 = vsel %vm191, %v198, %v200
    %v202 = vsel %vm190, %v180, %v183
    %v203 = vsel %vm193, %v189, 1326507024
    %v204 = vsel %vm192, %v186, %v203
    %v205 = vsel %vm191, %v202, %v204
    %v206 = vshll.u32 %v166, 8
    %v207 = vmul.u32.u64.compose %v206, %v205
    %v208 = vextract.low.u32 %v207
    %v209 = vextract.high.u32 %v207
    %v210 = vmul.u32.u64.compose %v206, %v201
    %v211 = vextract.low.u32 %v210
    %v212 = vextract.high.u32 %v210
    %v213 = vmul.u32 %v206, %v197
    %v214 = vadd.s32 %v209, %v211
    %vm215 = vc.u32 %v209, %v211
    %v216 = vadd.s32 %v212, 1
    %v217 = vsel %vm215, %v216, %v212
    %v218 = vadd.s32 %v213, %v217
    %v219 = vadd.s32 %v218, 536870912
    %v220 = vshrl.u32 %v219, 30
    %v221 = vshll.u32 %v220, 30
    %v222 = vsub.s32 %v218, %v221
    %vm223 = vcmp.lt.s32.totalorder %v222, 0
    %v224 = vsub.s32 0, %v222
    %v225 = vsel %vm223, %v224, %v222
    %v226 = vclz %v225
    %v227 = vsub.s32 %v226, 2
    %vm228 = vcmp.gt.s32.totalorder 0, %v227
    %v229 = vsel %vm228, 0, %v227
    %v230 = vsub.s32 32, %v229
    %v231 = vshll.u32 %v222, %v229
    %v232 = vshrl.u32 %v214, %v230
    %v233 = vor.u32 %v231, %v232
    %v234 = vsub.s32 4294967266, %v229
    %v235 = vadd.s32 %v234, 127
    %v236 = vshll.u32 %v235, 23
    %v237 = vor.u32 4788187, %v236
    %v238 = vand.u32 2147483647, %v237
    %v240 = vcvt.s32.f32 %v233
    %v241 = vmul.f32 %v240, %v238
    %v242 = vxor.u32 %v241, 2147483648
    %v243 = vsel %vm160, %v242, %v241
    %v244 = vsub.s32 4, %v220
    %v245 = vsel %vm160, %v244, %v220
    %v246 = vsel %vm159, %v45, %v243
    %v247 = vsel %vm159, 0, %v245
    %v248 = vcosq.f32.pop %v246
    %v249 = vsinq.f32.pop %v246
    %vm250 = vweird.f32 %v45
    %v251 = vadd.s32 %v247, 3
    %v252 = vand.u32 %v251, 3
    %vm253 = vcmp.lt.s32.totalorder %v252, 2
    %vm254 = vcmp.eq.s32.totalorder %v252, 0
    %v255 = vxor.u32 %v249, 2147483648
    %v256 = vsel %vm254, %v248, %v255
    %vm257 = vcmp.eq.s32.totalorder %v252, 2
    %v258 = vxor.u32 %v248, 2147483648
    %v259 = vsel %vm257, %v258, %v249
    %v260 = vsel %vm253, %v256, %v259
    %v261 = vsel %vm250, nan, %v260
    %v262 = vmul.f32 %v49, %v261
    %v263 = vadd.f32 %v41, %v262
    %s264 = scalar_lea.vmem [#allocation7], 1
    %265 = vst [vmem:[%s264] sm:$0x1] %v263
    %v266 = vstv %s34
    %v267 = vmul.f32 %v266, %v46
    %v268 = vadd.f32 %v43, %v267
    %s269 = scalar_lea.vmem [#allocation7], 2
    %270 = vst [vmem:[%s269] sm:$0x1] %v268
    %v271 = vand.u32 2147483647, %v51
    %vm272 = vcmp.le.f32.partialorder %v271, 0.7853982
    %vm273 = vcmp.lt.s32.totalorder %v51, 0
    %v274 = vand.u32 %v51, 2139095040
    %v275 = vshrl.u32 %v274, 23
    %v276 = vsub.s32 %v275, 127
    %v277 = vand.u32 2147483647, %v51
    %v278 = vand.u32 %v277, 8388607
    %v279 = vor.u32 %v278, 8388608
    %v280 = vsub.s32 0, %v279
    %v281 = vadd.s32 %v276, 1
    %vm282 = vcmp.gt.s32.totalorder %v281, 0
    %v283 = vsel %vm282, %v281, 0
    %v284 = vshrl.u32 %v283, 5
    %v285 = vand.u32 %v283, 31
    %v286 = vsub.s32 32, %v285
    %v287 = vshrl.u32 683565275, %v286
    %v288 = vshll.u32 683565275, %v285
    %v289 = vshrl.u32 2475754826, %v286
    %v290 = vor.u32 %v288, %v289
    %v291 = vshll.u32 2475754826, %v285
    %v292 = vshrl.u32 2131351028, %v286
    %v293 = vor.u32 %v291, %v292
    %v294 = vshll.u32 2131351028, %v285
    %v295 = vshrl.u32 2102212464, %v286
    %v296 = vor.u32 %v294, %v295
    %v297 = vshll.u32 2102212464, %v285
    %v298 = vshrl.u32 920167782, %v286
    %v299 = vor.u32 %v297, %v298
    %v300 = vshll.u32 920167782, %v285
    %v301 = vshrl.u32 1326507024, %v286
    %v302 = vor.u32 %v300, %v301
    %vm303 = vcmp.lt.s32.totalorder %v284, 1
    %vm304 = vcmp.lt.s32.totalorder %v284, 2
    %vm305 = vcmp.lt.s32.totalorder %v284, 3
    %vm306 = vcmp.lt.s32.totalorder %v284, 4
    %v307 = vsel %vm303, %v287, %v290
    %v308 = vsel %vm306, %v296, 2102212464
    %v309 = vsel %vm305, %v293, %v308
    %v310 = vsel %vm304, %v307, %v309
    %v311 = vsel %vm303, %v290, %v293
    %v312 = vsel %vm306, %v299, 920167782
    %v313 = vsel %vm305, %v296, %v312
    %v314 = vsel %vm304, %v311, %v313
    %v315 = vsel %vm303, %v293, %v296
    %v316 = vsel %vm306, %v302, 1326507024
    %v317 = vsel %vm305, %v299, %v316
    %v318 = vsel %vm304, %v315, %v317
    %v319 = vshll.u32 %v279, 8
    %v320 = vmul.u32.u64.compose %v319, %v318
    %v321 = vextract.low.u32 %v320
    %v322 = vextract.high.u32 %v320
    %v323 = vmul.u32.u64.compose %v319, %v314
    %v324 = vextract.low.u32 %v323
    %v325 = vextract.high.u32 %v323
    %v326 = vmul.u32 %v319, %v310
    %v327 = vadd.s32 %v322, %v324
    %vm328 = vc.u32 %v322, %v324
    %v329 = vadd.s32 %v325, 1
    %v330 = vsel %vm328, %v329, %v325
    %v331 = vadd.s32 %v326, %v330
    %v332 = vadd.s32 %v331, 536870912
    %v333 = vshrl.u32 %v332, 30
    %v334 = vshll.u32 %v333, 30
    %v335 = vsub.s32 %v331, %v334
    %vm336 = vcmp.lt.s32.totalorder %v335, 0
    %v337 = vsub.s32 0, %v335
    %v338 = vsel %vm336, %v337, %v335
    %v339 = vclz %v338
    %v340 = vsub.s32 %v339, 2
    %vm341 = vcmp.gt.s32.totalorder 0, %v340
    %v342 = vsel %vm341, 0, %v340
    %v343 = vsub.s32 32, %v342
    %v344 = vshll.u32 %v335, %v342
    %v345 = vshrl.u32 %v327, %v343
    %v346 = vor.u32 %v344, %v345
    %v347 = vsub.s32 4294967266, %v342
    %v348 = vadd.s32 %v347, 127
    %v349 = vshll.u32 %v348, 23
    %v350 = vor.u32 4788187, %v349
    %v351 = vand.u32 2147483647, %v350
    %v353 = vcvt.s32.f32 %v346
    %v354 = vmul.f32 %v353, %v351
    %v355 = vxor.u32 %v354, 2147483648
    %v356 = vsel %vm273, %v355, %v354
    %v357 = vsub.s32 4, %v333
    %v358 = vsel %vm273, %v357, %v333
    %v359 = vsel %vm272, %v51, %v356
    %v360 = vsel %vm272, 0, %v358
    %v361 = vcosq.f32.pop %v359
    %v362 = vsinq.f32.pop %v359
    %vm363 = vweird.f32 %v51
    %v364 = vand.u32 %v360, 3
    %v365 = vadd.s32 %v360, 3
    %v366 = vand.u32 %v365, 3
    %vm367 = vcmp.lt.s32.totalorder %v364, 2
    %vm368 = vcmp.eq.s32.totalorder %v364, 0
    %v369 = vxor.u32 %v362, 2147483648
    %v370 = vsel %vm368, %v361, %v369
    %vm371 = vcmp.eq.s32.totalorder %v364, 2
    %v372 = vxor.u32 %v361, 2147483648
    %v373 = vsel %vm371, %v372, %v362
    %v374 = vsel %vm367, %v370, %v373
    %vm375 = vcmp.lt.s32.totalorder %v366, 2
    %vm376 = vcmp.eq.s32.totalorder %v366, 0
    %v377 = vxor.u32 %v362, 2147483648
    %v378 = vsel %vm376, %v361, %v377
    %vm379 = vcmp.eq.s32.totalorder %v366, 2
    %v380 = vxor.u32 %v361, 2147483648
    %v381 = vsel %vm379, %v380, %v362
    %v382 = vsel %vm375, %v378, %v381
    %v383 = vrcp.pop %v374
    %v384 = vmul.f32 %v382, %v383
    %v385 = vsel %vm363, nan, %v384
    %v386 = vmul.f32 %v43, %v385
    %v387 = vstv %s38
    %v388 = vmul.f32 %v387, %v386
    %v389 = vadd.f32 %v45, %v388
    %s390 = scalar_lea.vmem [#allocation7], 3
    %391 = vst [vmem:[%s390] sm:$0x1] %v389
    // Predicated region
    $region14: #{tpu_custom_call.1} parent=1 // pred_check
      _
    $region15: #{tpu_custom_call.1} parent=1 // pred_check_branch
      %393 = sbr.rel (0) target = $region17
    $region16: #{tpu_custom_call.1} parent=1 // pred_region
      %s395 = ssub.s32 64, 64
      %396 = vsyncadd [#allocation6], %s395
      %s397 = sshll.u32 [#allocation7], 4
      %s398 = int_to_ptr.vmem [resolvable:$true] %s397
      %403 = dma.vmem_to_hbm [thread:$0]  %s398, 64, %s3, [#allocation6], 16, 16, 1
    $region17: #{tpu_custom_call.1} parent=1 // pred_fallthru
      _
    // Predicated region
    $region18: #{tpu_custom_call.1} parent=1 // pred_check
      _
    $region19: #{tpu_custom_call.1} parent=1 // pred_check_branch
      %405 = sbr.rel (0) target = $region21
    $region20: #{tpu_custom_call.1} parent=1 // pred_region
      %406 = dma.done [#allocation6], 64
    $region21: #{tpu_custom_call.1} parent=1 // pred_fallthru
      _
    %407 = vsyncpa [#allocation5], 1
    %408 = vsyncpa [#allocation6], 1

</llo_original>
